<compile_context>
chip_gen: v6e
topology: v6e:2x2x1
jax: 0.10.0
libtpu: 0.0.40
codegen_flags: <defaults>
</compile_context>

<pallas_src>
import jax
import jax.numpy as jnp
from jax.experimental import pallas as pl
from jax.experimental.pallas import tpu as pltpu


def _round_up(a: int, m: int) -> int:
    return (a + m - 1) // m * m


def _vmem_limit_bytes() -> int:
    """64 MiB scoped VMEM on 128-MiB chips (v5e/v6e), 32 MiB otherwise (v7x)."""
    try:
        info = pltpu.get_tpu_info()
        cap = getattr(info, "vmem_capacity_bytes", None)
        if cap is not None and cap >= 100 * 1024 * 1024:
            return 64 * 1024 * 1024
    except Exception:
        pass
    return 32 * 1024 * 1024


def _pick_tile_rows(rows: int, n: int, max_tile_rows: int):
    """Pick (tile_rows, rows_pad) so tile_rows exactly divides rows_pad.

    Avoids partial blocks and (in the common case) avoids any wrapper padding.
    """
    if rows <= max_tile_rows:
        # Single row-tile per image. If batch == 1, split it so the grid has
        # >= 2 steps and both v7x TensorCores get work (needs 8-aligned halves).
        if n == 1 and rows >= 16 and rows % 16 == 0:
            return rows // 2, rows
        return rows, rows
    rows8 = _round_up(rows, 8)
    # Largest multiple-of-8 tile <= max_tile_rows that divides rows8 exactly.
    for tr in range(max_tile_rows, 63, -8):
        if rows8 % tr == 0:
            return tr, rows8
    # Pathological row count: fall back to modest padding (rare).
    return 256, _round_up(rows, 256)


def _make_adjust_hue_kernel(apply_norm: bool):
    """Kernel factory. Only `apply_norm` is static; scalars come from SMEM."""

    def kernel(params_ref, x_ref, o_ref):
        # params_ref (SMEM, f32[7]): [hue, mean0..2, std0..2]
        # x_ref / o_ref: (3, tile_rows, 128) -- one image row-tile, 3 channels.
        hue = params_ref[0]

        r = x_ref[0].astype(jnp.float32)
        g = x_ref[1].astype(jnp.float32)
        b = x_ref[2].astype(jnp.float32)

        if apply_norm:  # denormalize to [0, 1] image space
            m0, m1, m2 = params_ref[1], params_ref[2], params_ref[3]
            s0, s1, s2 = params_ref[4], params_ref[5], params_ref[6]
            r = r * s0 + m0
            g = g * s1 + m1
            b = b * s2 + m2

        # ---- RGB -> HSV (torchvision _rgb2hsv) ----
        maxc = jnp.maximum(jnp.maximum(r, g), b)
        minc = jnp.minimum(jnp.minimum(r, g), b)
        cr = maxc - minc
        eqc = cr == 0.0
        ones = jnp.ones_like(maxc)
        # 2 exact divides instead of 4 (reciprocal-then-multiply).
        inv_maxc = 1.0 / jnp.where(eqc, ones, maxc)
        s = cr * inv_maxc
        inv_crd = 1.0 / jnp.where(eqc, ones, cr)
        rc = (maxc - r) * inv_crd
        gc = (maxc - g) * inv_crd
        bc = (maxc - b) * inv_crd

        max_is_r = maxc == r
        max_is_g = maxc == g
        h = jnp.where(max_is_r, bc - gc,
                      jnp.where(max_is_g, 2.0 + rc - bc, 4.0 + gc - rc))

        # Fold the "+1 mod 1" and the hue shift into a single frac():
        #   ((h/6 + 1) mod 1 + hue) mod 1 == frac(h/6 + 1 + hue)   (arg > 0)
        h = h * jnp.float32(1.0 / 6.0) + (1.0 + hue)
        h = h - jnp.floor(h)

        # ---- HSV -> RGB (torchvision _hsv2rgb) ----
        v = maxc
        h6 = h * 6.0
        i_f = jnp.floor(h6)          # float sector id in [0, 5]
        f = h6 - i_f
        p = jnp.clip(v * (1.0 - s), 0.0, 1.0)
        q = jnp.clip(v * (1.0 - s * f), 0.0, 1.0)
        t = jnp.clip(v * (1.0 - s * (1.0 - f)), 0.0, 1.0)

        # Sector masks computed once, reused for all three output channels.
        is0 = i_f == 0.0
        is1 = i_f == 1.0
        is2 = i_f == 2.0
        is3 = i_f == 3.0
        is4 = i_f == 4.0

        def pick(o0, o1, o2, o3, o4, o5):
            out = jnp.where(is4, o4, o5)
            out = jnp.where(is3, o3, out)
            out = jnp.where(is2, o2, out)
            out = jnp.where(is1, o1, out)
            return jnp.where(is0, o0, out)

        r_o = pick(v, q, p, p, t, v)
        g_o = pick(t, v, v, q, p, p)
        b_o = pick(p, p, t, v, v, q)

        if apply_norm:  # renormalize (scalar reciprocals, vector multiplies)
            r_o = (r_o - m0) * (1.0 / s0)
            g_o = (g_o - m1) * (1.0 / s1)
            b_o = (b_o - m2) * (1.0 / s2)

        o_ref[0] = r_o.astype(o_ref.dtype)
        o_ref[1] = g_o.astype(o_ref.dtype)
        o_ref[2] = b_o.astype(o_ref.dtype)

    return kernel


def adjust_hue(x: jnp.ndarray, hue_factor, mean=None, std=None,
               *, lane: int = 128, max_tile_rows: int = 512) -> jnp.ndarray:
    """AdjustHue forward for NCHW float RGB tensors via a Pallas TPU kernel."""
    if isinstance(hue_factor, (int, float)) and not (-0.5 <= float(hue_factor) <= 0.5):
        raise ValueError("hue_factor must be in [-0.5, 0.5]")
    n, c, h, w = x.shape
    if c != 3:
        raise ValueError("adjust_hue expects an RGB (C=3) input")
    # TODO(synk): uint8 inputs (torchvision rounds + clamps) are not handled;
    # float dtypes only, matching the [0,1]-range attack pipeline.

    apply_norm = (mean is not None) and (std is not None)
    if apply_norm:
        mean_a = jnp.asarray(mean, jnp.float32).reshape(3)
        std_a = jnp.asarray(std, jnp.float32).reshape(3)
    else:
        mean_a = jnp.zeros((3,), jnp.float32)
        std_a = jnp.ones((3,), jnp.float32)
    params = jnp.concatenate(
        [jnp.asarray(hue_factor, jnp.float32).reshape(1), mean_a, std_a])

    hw = h * w
    rows = pl.cdiv(hw, lane)
    tile_rows, rows_pad = _pick_tile_rows(rows, n, max_tile_rows)
    hw_pad = rows_pad * lane

    xf = x.reshape(n, 3, hw)
    if hw_pad != hw:              # only when H*W is not 128-aligned
        xf = jnp.pad(xf, ((0, 0), (0, 0), (0, hw_pad - hw)))
    xt = xf.reshape(n, 3, rows_pad, lane)

    kernel = _make_adjust_hue_kernel(apply_norm)

    out = pl.pallas_call(
        kernel,
        out_shape=jax.ShapeDtypeStruct((n, 3, rows_pad, lane), x.dtype),
        grid_spec=pltpu.PrefetchScalarGridSpec(
            num_scalar_prefetch=1,
            grid=(n, rows_pad // tile_rows),
            in_specs=[
                pl.BlockSpec((None, 3, tile_rows, lane),
                             lambda i, j, params: (i, 0, j, 0)),
            ],
            out_specs=pl.BlockSpec((None, 3, tile_rows, lane),
                                   lambda i, j, params: (i, 0, j, 0)),
        ),
        compiler_params=pltpu.CompilerParams(
            dimension_semantics=("parallel", "parallel"),
            vmem_limit_bytes=_vmem_limit_bytes(),
        ),
    )(params, xt)

    out = out.reshape(n, 3, hw_pad)
    if hw_pad != hw:
        out = out[:, :, :hw]
    return out.reshape(n, 3, h, w)


def _reference(x: jnp.ndarray, hue_factor: float, mean=None, std=None) -> jnp.ndarray:
    """Pure-JAX reference (torchvision-faithful formulas, full arrays)."""
    r = x[:, 0].astype(jnp.float32)
    g = x[:, 1].astype(jnp.float32)
    b = x[:, 2].astype(jnp.float32)
    if mean is not None:
        mean = jnp.asarray(mean, jnp.float32)
        std = jnp.asarray(std, jnp.float32)
        r = r * std[0] + mean[0]
        g = g * std[1] + mean[1]
        b = b * std[2] + mean[2]

    maxc = jnp.maximum(jnp.maximum(r, g), b)
    minc = jnp.minimum(jnp.minimum(r, g), b)
    eqc = maxc == minc
    cr = maxc - minc
    ones = jnp.ones_like(maxc)
    s = cr / jnp.where(eqc, ones, maxc)
    crd = jnp.where(eqc, ones, cr)
    rc = (maxc - r) / crd
    gc = (maxc - g) / crd
    bc = (maxc - b) / crd
    hr = jnp.where(maxc == r, bc - gc, 0.0)
    hg = jnp.where((maxc == g) & (maxc != r), 2.0 + rc - bc, 0.0)
    hb = jnp.where((maxc != r) & (maxc != g), 4.0 + gc - rc, 0.0)
    hh = jnp.mod(hr + hg + hb, 6.0) / 6.0
    hh = jnp.mod(hh + jnp.float32(hue_factor), 1.0)

    i = jnp.floor(hh * 6.0)
    f = hh * 6.0 - i
    i = i.astype(jnp.int32) % 6
    v = maxc
    p = jnp.clip(v * (1.0 - s), 0.0, 1.0)
    q = jnp.clip(v * (1.0 - s * f), 0.0, 1.0)
    t = jnp.clip(v * (1.0 - s * (1.0 - f)), 0.0, 1.0)

    def pick(o0, o1, o2, o3, o4, o5):
        out = o5
        out = jnp.where(i == 4, o4, out)
        out = jnp.where(i == 3, o3, out)
        out = jnp.where(i == 2, o2, out)
        out = jnp.where(i == 1, o1, out)
        return jnp.where(i == 0, o0, out)

    r_o = pick(v, q, p, p, t, v)
    g_o = pick(t, v, v, q, p, p)
    b_o = pick(p, p, t, v, v, q)
    if mean is not None:
        r_o = (r_o - mean[0]) / std[0]
        g_o = (g_o - mean[1]) / std[1]
        b_o = (b_o - mean[2]) / std[2]
    return jnp.stack([r_o, g_o, b_o], axis=1).astype(x.dtype)


if __name__ == "__main__":
    key = jax.random.PRNGKey(0)
    # Small RGB batch in [0, 1]  (AdjustHue requires 3 channels).
    x = jax.random.uniform(key, (2, 3, 16, 16), dtype=jnp.float32)
    hue_factor = 0.1

    # Default module config: mean=None, std=None (input already in [0,1]).
    out = jax.block_until_ready(adjust_hue(x, hue_factor))
    ref = _reference(x, hue_factor)
    assert out.shape == x.shape, out.shape
    err = float(jnp.max(jnp.abs(out - ref)))
    assert err < 2e-5, err

    # Fused denormalize / renormalize path.
    mean = (0.485, 0.456, 0.406)
    std = (0.229, 0.224, 0.225)
    xn = (x - jnp.array(mean).reshape(1, 3, 1, 1)) / jnp.array(std).reshape(1, 3, 1, 1)
    out2 = jax.block_until_ready(adjust_hue(xn, hue_factor, mean, std))
    ref2 = _reference(xn, hue_factor, mean, std)
    err2 = float(jnp.max(jnp.abs(out2 - ref2)))
    assert err2 < 2e-5, err2

    # Different hue value reuses the same compiled kernel (runtime SMEM scalar).
    out3 = jax.block_until_ready(adjust_hue(x, -0.25))
    ref3 = _reference(x, -0.25)
    assert float(jnp.max(jnp.abs(out3 - ref3))) < 2e-5

    print("KERNEL_OK")
</pallas_src>

<mosaic_0001>
module attributes {stable_mosaic.version = 11 : i64} {
  func.func @kernel(%arg0: i32, %arg1: i32, %arg2: memref<7xf32, #tpu.memory_space<smem>>, %arg3: memref<1x3x2x128xf32, #tpu.memory_space<vmem>>, %arg4: memref<1x3x2x128xf32, #tpu.memory_space<vmem>>) attributes {dimension_semantics = [#tpu.dimension_semantics<parallel>, #tpu.dimension_semantics<parallel>], iteration_bounds = array<i64: 2, 1>, scalar_prefetch = 1 : i64, scratch_operands = 0 : i64, tpu.core_type = #tpu.core_type<tc>, window_params = [{transform_indices = @transform_0, window_bounds = array<i64: 1, 3, 2, 128>}, {transform_indices = @transform_1, window_bounds = array<i64: 1, 3, 2, 128>}]} {
    %c0 = arith.constant 0 : index
    %0 = memref.load %arg2[%c0] : memref<7xf32, #tpu.memory_space<smem>>
    %c0_0 = arith.constant 0 : index
    %c0_1 = arith.constant 0 : index
    %c0_2 = arith.constant 0 : index
    %c0_3 = arith.constant 0 : index
    %1 = vector.load %arg3[%c0_0, %c0_1, %c0_2, %c0_3] : memref<1x3x2x128xf32, #tpu.memory_space<vmem>>, vector<1x1x2x128xf32>
    %2 = vector.shape_cast %1 : vector<1x1x2x128xf32> to vector<2x128xf32>
    %c0_4 = arith.constant 0 : index
    %c1 = arith.constant 1 : index
    %c0_5 = arith.constant 0 : index
    %c0_6 = arith.constant 0 : index
    %3 = vector.load %arg3[%c0_4, %c1, %c0_5, %c0_6] : memref<1x3x2x128xf32, #tpu.memory_space<vmem>>, vector<1x1x2x128xf32>
    %4 = vector.shape_cast %3 : vector<1x1x2x128xf32> to vector<2x128xf32>
    %c0_7 = arith.constant 0 : index
    %c2 = arith.constant 2 : index
    %c0_8 = arith.constant 0 : index
    %c0_9 = arith.constant 0 : index
    %5 = vector.load %arg3[%c0_7, %c2, %c0_8, %c0_9] : memref<1x3x2x128xf32, #tpu.memory_space<vmem>>, vector<1x1x2x128xf32>
    %6 = vector.shape_cast %5 : vector<1x1x2x128xf32> to vector<2x128xf32>
    %7 = arith.maximumf %2, %4 : vector<2x128xf32>
    %8 = arith.maximumf %7, %6 : vector<2x128xf32>
    %9 = arith.minimumf %2, %4 : vector<2x128xf32>
    %10 = arith.minimumf %9, %6 : vector<2x128xf32>
    %11 = arith.subf %8, %10 : vector<2x128xf32>
    %cst = arith.constant 0.000000e+00 : f32
    %12 = vector.broadcast %cst : f32 to vector<2x128xf32>
    %13 = arith.cmpf oeq, %11, %12 : vector<2x128xf32>
    %cst_10 = arith.constant 1.000000e+00 : f32
    %14 = vector.broadcast %cst_10 : f32 to vector<2x128xf32>
    %15 = arith.select %13, %14, %8 : vector<2x128xi1>, vector<2x128xf32>
    %cst_11 = arith.constant 1.000000e+00 : f32
    %16 = vector.broadcast %cst_11 : f32 to vector<2x128xf32>
    %17 = arith.divf %16, %15 : vector<2x128xf32>
    %18 = arith.mulf %11, %17 : vector<2x128xf32>
    %19 = arith.select %13, %14, %11 : vector<2x128xi1>, vector<2x128xf32>
    %cst_12 = arith.constant 1.000000e+00 : f32
    %20 = vector.broadcast %cst_12 : f32 to vector<2x128xf32>
    %21 = arith.divf %20, %19 : vector<2x128xf32>
    %22 = arith.subf %8, %2 : vector<2x128xf32>
    %23 = arith.mulf %22, %21 : vector<2x128xf32>
    %24 = arith.subf %8, %4 : vector<2x128xf32>
    %25 = arith.mulf %24, %21 : vector<2x128xf32>
    %26 = arith.subf %8, %6 : vector<2x128xf32>
    %27 = arith.mulf %26, %21 : vector<2x128xf32>
    %28 = arith.cmpf oeq, %8, %2 : vector<2x128xf32>
    %29 = arith.cmpf oeq, %8, %4 : vector<2x128xf32>
    %30 = arith.subf %27, %25 : vector<2x128xf32>
    %cst_13 = arith.constant 2.000000e+00 : f32
    %31 = vector.broadcast %cst_13 : f32 to vector<2x128xf32>
    %32 = arith.addf %31, %23 : vector<2x128xf32>
    %33 = arith.subf %32, %27 : vector<2x128xf32>
    %cst_14 = arith.constant 4.000000e+00 : f32
    %34 = vector.broadcast %cst_14 : f32 to vector<2x128xf32>
    %35 = arith.addf %34, %25 : vector<2x128xf32>
    %36 = arith.subf %35, %23 : vector<2x128xf32>
    %37 = arith.select %29, %33, %36 : vector<2x128xi1>, vector<2x128xf32>
    %38 = arith.select %28, %30, %37 : vector<2x128xi1>, vector<2x128xf32>
    %cst_15 = arith.constant 0.166666672 : f32
    %39 = vector.broadcast %cst_15 : f32 to vector<2x128xf32>
    %40 = arith.mulf %38, %39 : vector<2x128xf32>
    %cst_16 = arith.constant 1.000000e+00 : f32
    %41 = arith.addf %cst_16, %0 : f32
    %42 = vector.broadcast %41 : f32 to vector<2x128xf32>
    %43 = arith.addf %40, %42 : vector<2x128xf32>
    %44 = math.floor %43 : vector<2x128xf32>
    %45 = arith.subf %43, %44 : vector<2x128xf32>
    %cst_17 = arith.constant 6.000000e+00 : f32
    %46 = vector.broadcast %cst_17 : f32 to vector<2x128xf32>
    %47 = arith.mulf %45, %46 : vector<2x128xf32>
    %48 = math.floor %47 : vector<2x128xf32>
    %49 = arith.subf %47, %48 : vector<2x128xf32>
    %cst_18 = arith.constant 1.000000e+00 : f32
    %50 = vector.broadcast %cst_18 : f32 to vector<2x128xf32>
    %51 = arith.subf %50, %18 : vector<2x128xf32>
    %52 = arith.mulf %8, %51 : vector<2x128xf32>
    %cst_19 = arith.constant 0.000000e+00 : f32
    %cst_20 = arith.constant 1.000000e+00 : f32
    %53 = vector.broadcast %cst_19 : f32 to vector<2x128xf32>
    %54 = arith.maximumf %53, %52 : vector<2x128xf32>
    %55 = vector.broadcast %cst_20 : f32 to vector<2x128xf32>
    %56 = arith.minimumf %55, %54 : vector<2x128xf32>
    %57 = arith.mulf %18, %49 : vector<2x128xf32>
    %cst_21 = arith.constant 1.000000e+00 : f32
    %58 = vector.broadcast %cst_21 : f32 to vector<2x128xf32>
    %59 = arith.subf %58, %57 : vector<2x128xf32>
    %60 = arith.mulf %8, %59 : vector<2x128xf32>
    %cst_22 = arith.constant 0.000000e+00 : f32
    %cst_23 = arith.constant 1.000000e+00 : f32
    %61 = vector.broadcast %cst_22 : f32 to vector<2x128xf32>
    %62 = arith.maximumf %61, %60 : vector<2x128xf32>
    %63 = vector.broadcast %cst_23 : f32 to vector<2x128xf32>
    %64 = arith.minimumf %63, %62 : vector<2x128xf32>
    %cst_24 = arith.constant 1.000000e+00 : f32
    %65 = vector.broadcast %cst_24 : f32 to vector<2x128xf32>
    %66 = arith.subf %65, %49 : vector<2x128xf32>
    %67 = arith.mulf %18, %66 : vector<2x128xf32>
    %cst_25 = arith.constant 1.000000e+00 : f32
    %68 = vector.broadcast %cst_25 : f32 to vector<2x128xf32>
    %69 = arith.subf %68, %67 : vector<2x128xf32>
    %70 = arith.mulf %8, %69 : vector<2x128xf32>
    %cst_26 = arith.constant 0.000000e+00 : f32
    %cst_27 = arith.constant 1.000000e+00 : f32
    %71 = vector.broadcast %cst_26 : f32 to vector<2x128xf32>
    %72 = arith.maximumf %71, %70 : vector<2x128xf32>
    %73 = vector.broadcast %cst_27 : f32 to vector<2x128xf32>
    %74 = arith.minimumf %73, %72 : vector<2x128xf32>
    %cst_28 = arith.constant 0.000000e+00 : f32
    %75 = vector.broadcast %cst_28 : f32 to vector<2x128xf32>
    %76 = arith.cmpf oeq, %48, %75 : vector<2x128xf32>
    %cst_29 = arith.constant 1.000000e+00 : f32
    %77 = vector.broadcast %cst_29 : f32 to vector<2x128xf32>
    %78 = arith.cmpf oeq, %48, %77 : vector<2x128xf32>
    %cst_30 = arith.constant 2.000000e+00 : f32
    %79 = vector.broadcast %cst_30 : f32 to vector<2x128xf32>
    %80 = arith.cmpf oeq, %48, %79 : vector<2x128xf32>
    %cst_31 = arith.constant 3.000000e+00 : f32
    %81 = vector.broadcast %cst_31 : f32 to vector<2x128xf32>
    %82 = arith.cmpf oeq, %48, %81 : vector<2x128xf32>
    %cst_32 = arith.constant 4.000000e+00 : f32
    %83 = vector.broadcast %cst_32 : f32 to vector<2x128xf32>
    %84 = arith.cmpf oeq, %48, %83 : vector<2x128xf32>
    %85 = arith.select %84, %74, %8 : vector<2x128xi1>, vector<2x128xf32>
    %86 = arith.select %82, %56, %85 : vector<2x128xi1>, vector<2x128xf32>
    %87 = arith.select %80, %56, %86 : vector<2x128xi1>, vector<2x128xf32>
    %88 = arith.select %78, %64, %87 : vector<2x128xi1>, vector<2x128xf32>
    %89 = arith.select %76, %8, %88 : vector<2x128xi1>, vector<2x128xf32>
    %90 = arith.select %84, %56, %56 : vector<2x128xi1>, vector<2x128xf32>
    %91 = arith.select %82, %64, %90 : vector<2x128xi1>, vector<2x128xf32>
    %92 = arith.select %80, %8, %91 : vector<2x128xi1>, vector<2x128xf32>
    %93 = arith.select %78, %8, %92 : vector<2x128xi1>, vector<2x128xf32>
    %94 = arith.select %76, %74, %93 : vector<2x128xi1>, vector<2x128xf32>
    %95 = arith.select %84, %8, %64 : vector<2x128xi1>, vector<2x128xf32>
    %96 = arith.select %82, %8, %95 : vector<2x128xi1>, vector<2x128xf32>
    %97 = arith.select %80, %74, %96 : vector<2x128xi1>, vector<2x128xf32>
    %98 = arith.select %78, %56, %97 : vector<2x128xi1>, vector<2x128xf32>
    %99 = arith.select %76, %56, %98 : vector<2x128xi1>, vector<2x128xf32>
    %c0_33 = arith.constant 0 : index
    %c0_34 = arith.constant 0 : index
    %c0_35 = arith.constant 0 : index
    %c0_36 = arith.constant 0 : index
    %100 = vector.load %arg4[%c0_33, %c0_34, %c0_35, %c0_36] : memref<1x3x2x128xf32, #tpu.memory_space<vmem>>, vector<1x1x2x128xf32>
    %101 = vector.shape_cast %100 : vector<1x1x2x128xf32> to vector<2x128xf32>
    %102 = vector.shape_cast %89 : vector<2x128xf32> to vector<1x1x2x128xf32>
    tpu.vector_store %arg4[%c0_33, %c0_34, %c0_35, %c0_36], %102 {strides = array<i32>} : memref<1x3x2x128xf32, #tpu.memory_space<vmem>>, vector<1x1x2x128xf32>,
    %c0_37 = arith.constant 0 : index
    %c1_38 = arith.constant 1 : index
    %c0_39 = arith.constant 0 : index
    %c0_40 = arith.constant 0 : index
    %103 = vector.load %arg4[%c0_37, %c1_38, %c0_39, %c0_40] : memref<1x3x2x128xf32, #tpu.memory_space<vmem>>, vector<1x1x2x128xf32>
    %104 = vector.shape_cast %103 : vector<1x1x2x128xf32> to vector<2x128xf32>
    %105 = vector.shape_cast %94 : vector<2x128xf32> to vector<1x1x2x128xf32>
    tpu.vector_store %arg4[%c0_37, %c1_38, %c0_39, %c0_40], %105 {strides = array<i32>} : memref<1x3x2x128xf32, #tpu.memory_space<vmem>>, vector<1x1x2x128xf32>,
    %c0_41 = arith.constant 0 : index
    %c2_42 = arith.constant 2 : index
    %c0_43 = arith.constant 0 : index
    %c0_44 = arith.constant 0 : index
    %106 = vector.load %arg4[%c0_41, %c2_42, %c0_43, %c0_44] : memref<1x3x2x128xf32, #tpu.memory_space<vmem>>, vector<1x1x2x128xf32>
    %107 = vector.shape_cast %106 : vector<1x1x2x128xf32> to vector<2x128xf32>
    %108 = vector.shape_cast %99 : vector<2x128xf32> to vector<1x1x2x128xf32>
    tpu.vector_store %arg4[%c0_41, %c2_42, %c0_43, %c0_44], %108 {strides = array<i32>} : memref<1x3x2x128xf32, #tpu.memory_space<vmem>>, vector<1x1x2x128xf32>,
    return
  }
  func.func @transform_0(%arg0: i32, %arg1: i32, %arg2: memref<7xf32, #tpu.memory_space<smem>>) -> (i32, i32, i32, i32) {
    %c0_i32 = arith.constant 0 : i32
    %c0_i32_0 = arith.constant 0 : i32
    %c0_i32_1 = arith.constant 0 : i32
    return %arg0, %c0_i32, %arg1, %c0_i32_0 : i32, i32, i32, i32
  }
  func.func @transform_1(%arg0: i32, %arg1: i32, %arg2: memref<7xf32, #tpu.memory_space<smem>>) -> (i32, i32, i32, i32) {
    %c0_i32 = arith.constant 0 : i32
    %c0_i32_0 = arith.constant 0 : i32
    %c0_i32_1 = arith.constant 0 : i32
    return %arg0, %c0_i32, %arg1, %c0_i32_0 : i32, i32, i32, i32
  }
}

</mosaic_0001>

<llo_original>
// kernel: tpu_custom_call.1
$region0: #{tpu_custom_call.1}
  #allocation0 [shape = 'u32[]', space=smem, size = 0x4, offset = 0x4, fixed_abs, tag = 'smem constant byte address 0x4 - core index']
  #allocation1 [shape = 'u32[144,128]{1,0:T(1,128)}', space=vmem, size = 0x12000, scoped, tag = 'internal scratch']
  #allocation2 [shape = 's32[1]{0}', space=sflag, size = 0x4, scoped, tag = 'scoped memory for tpu_custom_call.1']
  #allocation3 [shape = 'u8[512]{0}', space=smem, size = 0x200, scoped, tag = 'prefetched SMEM operand 0']
  %s0 = inlined_call_operand.hbm [shape: f32[7], index: 0, kind: input, shape index: {}]
  %s1 = inlined_call_operand.hbm [shape: f32[2,3,2,128], index: 1, kind: input, shape index: {}]
  %s2 = inlined_call_operand.hbm [shape: f32[2,3,2,128], index: 2, kind: output, shape index: {}]
  %s3 = sld [smem:[#allocation0]]
  $region41: #{tpu_custom_call.1} parent=0
    _
  %s5 = ssub.s32 1, %s3
  %s6 = scalar_select 0, %s5, %s3
  %8 = dma.hbm_to_smem %s0, 16, [#allocation3], [#allocation2]
  %9 = dma.done [#allocation2], 16
  %10 = sfence
  $region1: #{tpu_custom_call.1} parent=0
    #allocation4 [shape = 'u8[6144]{0}', space=vmem, size = 0x1800, scoped, tag = 'input window, operand 1']
    #allocation5 [shape = 's32[2]{0}', space=sflag, size = 0x8, scoped, tag = 'scoped memory for tpu_custom_call.1']
    #allocation6 [shape = 's32[2]{0}', space=sflag, size = 0x8, scoped, tag = 'scoped memory for tpu_custom_call.1']
    #allocation7 [shape = 'u8[6144]{0}', space=vmem, size = 0x1800, scoped, tag = 'output window, operand 0']
    %11 = vsyncpa [#allocation5], 0
    %s12 = scalar_lea.sflag [#allocation5], 1
    %13 = vsyncpa %s12, 0
    %14 = vsyncpa [#allocation6], 0
    %s15 = scalar_lea.sflag [#allocation6], 1
    %16 = vsyncpa %s15, 0
    loop: start=0, step=1, limit=4
    $region2: #{tpu_custom_call.1} parent=1 // loop_pre_header
      _
    $region3: #{tpu_custom_call.1} parent=1 // loop_header
      %s18 = sphi 0, %s22
      %p19 = scmp.ge.s32.totalorder %s18, 4
      %s25 = sphi 0, %s37
      %s26 = sphi 0, %s33
      %s27 = sphi 0, %s25
      %s28 = sphi 0, %s26
      %s29 = sphi 0, %s27
      %s30 = sphi 0, %s28
      %s42 = sphi 0, %s44
      %s45 = sphi 0, %s42
      %s46 = sphi 0, %s45
      %s62 = sphi 0, %s46
      %s70 = sphi 0, %s72
      %s73 = sphi 0, %s70
      %s74 = sphi 0, %s73
      %s90 = sphi 0, %s74
    $region4: #{tpu_custom_call.1} parent=1 // loop_header_branch
      %21 = sbr.rel (%p19) target = $region8
    $region5: #{tpu_custom_call.1} parent=1 // loop_body
      %s23 = ssub.s32 %s18, 1
      %s24 = ssub.s32 %s18, 2
      %s31 = sadd.s32 1, %s26
      %p32 = scmp.ge.s32.totalorder %s31, 1
      %s33 = scalar_select %p32, 0, %s31
      %s34 = sadd.s32 1, %s25
      %s35 = scalar_select %p32, %s34, %s25
      %p36 = scmp.ge.s32.totalorder %s35, 2
      %s37 = scalar_select %p36, 0, %s35
      %s38 = ssub.s32 %s25, %s37
      %s39 = ssub.s32 %s26, %s33
      %s40 = sor.u32 %s38, %s39
      %p41 = scmp.eq.s32.totalorder %s40, 0
      %s43 = sadd.s32 %s42, 1
      %s44 = scalar_select %p41, %s42, %s43
      %p47 = pneg %p41
      %p48 = scmp.eq.s32.totalorder %s18, 1
      %p49 = por %p47, %p48
      %p50 = scmp.ne.s32.totalorder %s42, %s45
      %p51 = scmp.eq.s32.totalorder %s18, 0
      %p52 = por %p50, %p51
      %p53 = scmp.ne.s32.totalorder %s42, %s45
      %p54 = scmp.eq.s32.totalorder %s23, 1
      %p55 = por %p53, %p54
      %p56 = scmp.ne.s32.totalorder %s45, %s46
      %p57 = scmp.eq.s32.totalorder %s23, 0
      %p58 = por %p56, %p57
      %p59 = scmp.ne.s32.totalorder %s45, %s46
      %p60 = scmp.eq.s32.totalorder %s24, 1
      %p61 = por %p59, %p60
      %p63 = scmp.ne.s32.totalorder %s46, %s62
      %p64 = scmp.eq.s32.totalorder %s24, 0
      %p65 = por %p63, %p64
      %s66 = ssub.s32 %s25, %s37
      %s67 = ssub.s32 %s26, %s33
      %s68 = sor.u32 %s66, %s67
      %p69 = scmp.eq.s32.totalorder %s68, 0
      %s71 = sadd.s32 %s70, 1
      %s72 = scalar_select %p69, %s70, %s71
      %p75 = pneg %p69
      %p76 = scmp.eq.s32.totalorder %s18, 1
      %p77 = por %p75, %p76
      %p78 = scmp.ne.s32.totalorder %s70, %s73
      %p79 = scmp.eq.s32.totalorder %s18, 0
      %p80 = por %p78, %p79
      %p81 = scmp.ne.s32.totalorder %s70, %s73
      %p82 = scmp.eq.s32.totalorder %s23, 1
      %p83 = por %p81, %p82
      %p84 = scmp.ne.s32.totalorder %s73, %s74
      %p85 = scmp.eq.s32.totalorder %s23, 0
      %p86 = por %p84, %p85
      %p87 = scmp.ne.s32.totalorder %s73, %s74
      %p88 = scmp.eq.s32.totalorder %s24, 1
      %p89 = por %p87, %p88
      %p91 = scmp.ne.s32.totalorder %s74, %s90
      %p92 = scmp.eq.s32.totalorder %s24, 0
      %p93 = por %p91, %p92
      %p94 = scmp.le.s32.totalorder 1, %s18
      %p95 = scmp.lt.s32.totalorder %s18, 3
      %p96 = pnand %p94, %p95
      %p97 = pneg %p96
      // Predicated region
      $region9: #{tpu_custom_call.1} parent=5 // pred_check
        _
      $region10: #{tpu_custom_call.1} parent=5 // pred_check_branch
        %99 = sbr.rel (%p96) target = $region12
      $region11: #{tpu_custom_call.1} parent=5 // pred_region
        %s100 = ssub.s32 %s18, 1
      $region12: #{tpu_custom_call.1} parent=5 // pred_fallthru
        _
      %p101 = scmp.lt.s32.totalorder %s18, 2
      // Predicated region
      $region13: #{tpu_custom_call.1} parent=5 // pred_check
        %p102 = pneg %p101
      $region14: #{tpu_custom_call.1} parent=5 // pred_check_branch
        %104 = sbr.rel (%p102) target = $region16
      $region15: #{tpu_custom_call.1} parent=5 // pred_region
        // Predicated region
        $region17: #{tpu_custom_call.1} parent=15 // pred_check
          %p105 = pneg %p52
        $region18: #{tpu_custom_call.1} parent=15 // pred_check_branch
          %107 = sbr.rel (%p105) target = $region20
        $region19: #{tpu_custom_call.1} parent=15 // pred_region
          %s108 = sand.u32 %s42, 1
          %s109 = scalar_lea.sflag [#allocation5], %s108
          %s110 = sand.u32 %s42, 1
          %s111 = smul.addr %s110, 6
          %s112 = scalar_lea.vmem [#allocation4], %s111
          %s114 = ssub.s32 96, 96
          %115 = vsyncadd %s109, %s114
          %s116 = smul.addr %s25, 3
          %s117 = sadd.s32 %s26, %s116
          %s118 = smul.addr %s117, 32
          %s119 = scalar_lea.hbm %s1, %s118
          %s120 = sshll.u32 %s112, 4
          %s121 = int_to_ptr.vmem [resolvable:$true] %s120
          %126 = dma.hbm_to_vmem [thread:$0]  %s119, 96, %s121, %s109, 32, 32, 2
        $region20: #{tpu_custom_call.1} parent=15 // pred_fallthru
          _
      $region16: #{tpu_custom_call.1} parent=5 // pred_fallthru
        _
      %p127 = scmp.le.s32.totalorder 1, %s18
      %p128 = scmp.lt.s32.totalorder %s18, 3
      %p129 = pnand %p127, %p128
      %p130 = pneg %p129
      // Predicated region
      $region21: #{tpu_custom_call.1} parent=5 // pred_check
        _
      $region22: #{tpu_custom_call.1} parent=5 // pred_check_branch
        %132 = sbr.rel (%p129) target = $region24
      $region23: #{tpu_custom_call.1} parent=5 // pred_region
        %s133 = ssub.s32 %s18, 1
        %s134 = sand.u32 %s45, 1
        %s135 = scalar_lea.sflag [#allocation5], %s134
        %s136 = sand.u32 %s45, 1
        %s137 = smul.addr %s136, 6
        %s138 = scalar_lea.vmem [#allocation4], %s137
        // Predicated region
        $region25: #{tpu_custom_call.1} parent=23 // pred_check
          %p139 = pneg %p58
        $region26: #{tpu_custom_call.1} parent=23 // pred_check_branch
          %141 = sbr.rel (%p139) target = $region28
        $region27: #{tpu_custom_call.1} parent=23 // pred_region
          %142 = dma.done %s135, 96
        $region28: #{tpu_custom_call.1} parent=23 // pred_fallthru
          _
        %s143 = sand.u32 %s45, 1
        %s144 = scalar_lea.sflag [#allocation5], %s143
        %s145 = sand.u32 %s45, 1
        %s146 = smul.addr %s145, 6
        %s147 = scalar_lea.vmem [#allocation4], %s146
        %p148 = pneg %p58
        %p149 = pneg %p55
        %p150 = pneg %p86
        %p151 = pneg %p83
        %s152 = sand.u32 %s73, 1
        %s153 = scalar_lea.sflag [#allocation6], %s152
        %s154 = sand.u32 %s73, 1
        %s155 = smul.addr %s154, 6
        %s156 = scalar_lea.vmem [#allocation7], %s155
        %s157 = sld [smem:[#allocation3]]
        %v158 = vld [vmem:[%s138] sm:$0x3]
        %s159 = scalar_lea.vmem %s138, 2 [#allocation4]
        %v160 = vld [vmem:[%s159] sm:$0x3]
        %s161 = scalar_lea.vmem %s138, 4 [#allocation4]
        %v162 = vld [vmem:[%s161] sm:$0x3]
        %v163 = vmax.f32 %v158, %v160
        %v164 = vmax.f32 %v163, %v162
        %v165 = vmin.f32 %v158, %v160
        %v166 = vmin.f32 %v165, %v162
        %v167 = vsub.f32 %v164, %v166
        %vm168 = vcmp.eq.f32.partialorder %v167, 0.0
        %v169 = vsel %vm168, 1.0, %v164
        %v170 = vrcp.pop %v169
        %v171 = vmul.f32 1.0, %v170
        %v172 = vmul.f32 %v167, %v171
        %v173 = vsel %vm168, 1.0, %v167
        %v174 = vrcp.pop %v173
        %v175 = vmul.f32 1.0, %v174
        %v176 = vsub.f32 %v164, %v158
        %v177 = vmul.f32 %v176, %v175
        %v178 = vsub.f32 %v164, %v160
        %v179 = vmul.f32 %v178, %v175
        %v180 = vsub.f32 %v164, %v162
        %v181 = vmul.f32 %v180, %v175
        %vm182 = vcmp.eq.f32.partialorder %v164, %v158
        %vm183 = vcmp.eq.f32.partialorder %v164, %v160
        %v184 = vsub.f32 %v181, %v179
        %v185 = vadd.f32 %v177, 2.0
        %v186 = vsub.f32 %v185, %v181
        %v187 = vadd.f32 %v179, 4.0
        %v188 = vsub.f32 %v187, %v177
        %v189 = vsel %vm183, %v186, %v188
        %v190 = vsel %vm182, %v184, %v189
        %v191 = vmul.f32 %v190, 0.16666667
        %s192 = sadd.f32 %s157, 1.0
        %v193 = vstv %s192
        %v194 = vadd.f32 %v191, %v193
        %v195 = vfloor.f32 %v194
        %v196 = vsub.f32 %v194, %v195
        %v197 = vmul.f32 %v196, 6.0
        %v198 = vfloor.f32 %v197
        %v199 = vsub.f32 %v197, %v198
        %v200 = vsub.f32 1.0, %v172
        %v201 = vmul.f32 %v164, %v200
        %v202 = vmax.f32 %v201, 0.0
        %v203 = vmin.f32 %v202, 1.0
        %v204 = vmul.f32 %v172, %v199
        %v205 = vsub.f32 1.0, %v204
        %v206 = vmul.f32 %v164, %v205
        %v207 = vmax.f32 %v206, 0.0
        %v208 = vmin.f32 %v207, 1.0
        %v209 = vsub.f32 1.0, %v199
        %v210 = vmul.f32 %v172, %v209
        %v211 = vsub.f32 1.0, %v210
        %v212 = vmul.f32 %v164, %v211
        %v213 = vmax.f32 %v212, 0.0
        %v214 = vmin.f32 %v213, 1.0
        %vm215 = vcmp.eq.f32.partialorder %v198, 0.0
        %vm216 = vcmp.eq.f32.partialorder %v198, 1.0
        %vm217 = vcmp.eq.f32.partialorder %v198, 2.0
        %vm218 = vcmp.eq.f32.partialorder %v198, 3.0
        %vm219 = vcmp.eq.f32.partialorder %v198, 4.0
        %v220 = vsel %vm219, %v214, %v164
        %v221 = vsel %vm218, %v203, %v220
        %v222 = vsel %vm217, %v203, %v221
        %v223 = vsel %vm216, %v208, %v222
        %v224 = vsel %vm215, %v164, %v223
        %v225 = vsel %vm218, %v208, %v203
        %v226 = vsel %vm217, %v164, %v225
        %v227 = vsel %vm216, %v164, %v226
        %v228 = vsel %vm215, %v214, %v227
        %v229 = vsel %vm219, %v164, %v208
        %v230 = vsel %vm218, %v164, %v229
        %v231 = vsel %vm217, %v214, %v230
        %v232 = vsel %vm216, %v203, %v231
        %v233 = vsel %vm215, %v203, %v232
        %234 = vst [vmem:[%s156] sm:$0x3] %v224
        %s235 = scalar_lea.vmem %s156, 2 [#allocation7]
        %236 = vst [vmem:[%s235] sm:$0x3] %v228
        %s237 = scalar_lea.vmem %s156, 4 [#allocation7]
        %238 = vst [vmem:[%s237] sm:$0x3] %v233
        %s239 = sand.u32 %s73, 1
        %s240 = scalar_lea.sflag [#allocation6], %s239
        %s241 = sand.u32 %s73, 1
        %s242 = smul.addr %s241, 6
        %s243 = scalar_lea.vmem [#allocation7], %s242
        // Predicated region
        $region29: #{tpu_custom_call.1} parent=23 // pred_check
          %p244 = pneg %p83
        $region30: #{tpu_custom_call.1} parent=23 // pred_check_branch
          %246 = sbr.rel (%p244) target = $region32
        $region31: #{tpu_custom_call.1} parent=23 // pred_region
          %s248 = ssub.s32 96, 96
          %249 = vsyncadd %s240, %s248
          %s250 = smul.addr %s27, 3
          %s251 = sadd.s32 %s28, %s250
          %s252 = smul.addr %s251, 32
          %s253 = scalar_lea.hbm %s2, %s252
          %s254 = sshll.u32 %s243, 4
          %s255 = int_to_ptr.vmem [resolvable:$true] %s254
          %260 = dma.vmem_to_hbm [thread:$0]  %s255, 96, %s253, %s240, 32, 32, 2
        $region32: #{tpu_custom_call.1} parent=23 // pred_fallthru
          _
      $region24: #{tpu_custom_call.1} parent=5 // pred_fallthru
        _
      %p261 = scmp.le.s32.totalorder 2, %s18
      // Predicated region
      $region33: #{tpu_custom_call.1} parent=5 // pred_check
        %p262 = pneg %p261
      $region34: #{tpu_custom_call.1} parent=5 // pred_check_branch
        %264 = sbr.rel (%p262) target = $region36
      $region35: #{tpu_custom_call.1} parent=5 // pred_region
        %s265 = ssub.s32 %s18, 2
        // Predicated region
        $region37: #{tpu_custom_call.1} parent=35 // pred_check
          %p266 = pneg %p89
        $region38: #{tpu_custom_call.1} parent=35 // pred_check_branch
          %268 = sbr.rel (%p266) target = $region40
        $region39: #{tpu_custom_call.1} parent=35 // pred_region
          %s269 = sand.u32 %s74, 1
          %s270 = scalar_lea.sflag [#allocation6], %s269
          %s271 = sand.u32 %s74, 1
          %s272 = smul.addr %s271, 6
          %s273 = scalar_lea.vmem [#allocation7], %s272
          %274 = dma.done %s270, 96
        $region40: #{tpu_custom_call.1} parent=35 // pred_fallthru
          _
      $region36: #{tpu_custom_call.1} parent=5 // pred_fallthru
        _
    $region6: #{tpu_custom_call.1} parent=1 // loop_footer
      %s22 = sadd.s32 1, %s18
    $region7: #{tpu_custom_call.1} parent=1 // loop_footer_branch
      %17 = sbr.rel target = $region3
    $region8: #{tpu_custom_call.1} parent=1 // loop_exit
      _
    %275 = vsyncpa [#allocation5], 1
    %s276 = scalar_lea.sflag [#allocation5], 1
    %277 = vsyncpa %s276, 1
    %278 = vsyncpa [#allocation6], 1
    %s279 = scalar_lea.sflag [#allocation6], 1
    %280 = vsyncpa %s279, 1

</llo_original>
